<compile_context>
chip_gen: v7x
topology: tpu7x:2x2x1
jax: 0.10.0
libtpu: 0.0.40
codegen_flags: <defaults>
</compile_context>

<pallas_src>
import functools

import jax
import jax.numpy as jnp
from jax import lax
from jax.experimental import pallas as pl
from jax.experimental.pallas import tpu as pltpu


@functools.lru_cache(maxsize=None)
def _vmem_limit_bytes() -> int:
    """~80% of physical VMEM: headroom on v7x (64 MiB), roomy on v5e/v6e (128 MiB)."""
    try:
        info = pltpu.get_tpu_info()
        cap = int(getattr(info, "vmem_capacity_bytes", 0) or 0)
        if cap > 0:
            return (cap * 4) // 5
    except Exception:
        pass
    return 50 * 1024 * 1024  # safe default for every generation


def _pick_tile(dim: int, candidates) -> int:
    """Largest candidate tile that divides `dim`, else the full dim (always legal)."""
    for c in candidates:
        if dim % c == 0:
            return c
    return dim


# ---------------------------------------------------------------------------
# Tiled Pallas matmul (w_qkv and w_o projections, no bias)
# ---------------------------------------------------------------------------
def _matmul_kernel(x_ref, w_ref, o_ref, acc_ref):
    @pl.when(pl.program_id(2) == 0)
    def _init():
        acc_ref[...] = jnp.zeros_like(acc_ref)

    acc_ref[...] += jnp.dot(
        x_ref[...], w_ref[...], preferred_element_type=jnp.float32
    )

    @pl.when(pl.program_id(2) == pl.num_programs(2) - 1)
    def _finalize():
        o_ref[...] = acc_ref[...].astype(o_ref.dtype)


def pallas_linear(x2d: jax.Array, w: jax.Array) -> jax.Array:
    """y = x2d @ w, x2d: (M, K), w: (K, N). Tiled + pipelined."""
    M, K = x2d.shape
    K2, N = w.shape
    assert K == K2

    # Never feed tiny row tiles into the MXU for big M: pad M up to 128 instead.
    if M > 512 and M % 128 != 0:
        Mp = ((M + 127) // 128) * 128
        xp = jnp.pad(x2d, ((0, Mp - M), (0, 0)))
        return pallas_linear(xp, w)[:M]

    tm = _pick_tile(M, (512, 256, 128))
    tn = _pick_tile(N, (512, 256, 128))
    tk = _pick_tile(K, (1024, 512, 256, 128))

    itemsize = x2d.dtype.itemsize
    cost = pl.CostEstimate(
        flops=2 * M * N * K,
        transcendentals=0,
        bytes_accessed=(M * K + K * N + M * N) * itemsize,
    )

    return pl.pallas_call(
        _matmul_kernel,
        out_shape=jax.ShapeDtypeStruct((M, N), x2d.dtype),
        grid_spec=pltpu.PrefetchScalarGridSpec(
            num_scalar_prefetch=0,
            grid=(M // tm, N // tn, K // tk),
            in_specs=[
                pl.BlockSpec((tm, tk), lambda i, j, k: (i, k)),
                pl.BlockSpec((tk, tn), lambda i, j, k: (k, j)),
            ],
            out_specs=pl.BlockSpec((tm, tn), lambda i, j, k: (i, j)),
            scratch_shapes=[pltpu.VMEM((tm, tn), jnp.float32)],
        ),
        compiler_params=pltpu.CompilerParams(
            dimension_semantics=("parallel", "parallel", "arbitrary"),
            vmem_limit_bytes=_vmem_limit_bytes(),
        ),
        cost_estimate=cost,
    )(x2d, w)


# ---------------------------------------------------------------------------
# Flash-style GQA attention kernel.
# Grid: (B, Hkv, num_q_tiles, num_kv_tiles); kv tiles innermost ("arbitrary").
# One K/V tile per grid step, shared by ALL `group` query heads of that kv
# head via a single fused (group*tq, hd) x (hd, tk) matmul pair.
# ---------------------------------------------------------------------------
def _flash_attn_kernel(q_ref, k_ref, v_ref, o_ref,
                       qs_ref, m_ref, l_ref, acc_ref,
                       *, scale, is_causal, group, tq, tk, hd):
    qi = pl.program_id(2)
    ki = pl.program_id(3)
    gq = group * tq

    @pl.when(ki == 0)
    def _init():
        m_ref[...] = jnp.full(m_ref.shape, -jnp.inf, jnp.float32)
        l_ref[...] = jnp.zeros(l_ref.shape, jnp.float32)
        acc_ref[...] = jnp.zeros(acc_ref.shape, jnp.float32)
        # Pre-scale q ONCE per q tile (native dtype for narrow MXU operands).
        # (group, tq, hd) -> (group*tq, hd): free leading-dim merge (tq % 8 == 0).
        qf = q_ref[0].reshape(gq, hd).astype(jnp.float32) * jnp.float32(scale)
        qs_ref[...] = qf.astype(qs_ref.dtype)

    def _tile_update(apply_mask):
        k = k_ref[0, 0]                          # (tk, hd) native dtype
        v = v_ref[0, 0]                          # (tk, hd) native dtype
        q = qs_ref[...]                          # (gq, hd) pre-scaled

        # One fused QK^T for the whole query-head group (contract last dims).
        s = lax.dot_general(
            q, k, (((1,), (1,)), ((), ())),
            preferred_element_type=jnp.float32,
        )                                        # (gq, tk) f32

        if apply_mask:                           # only on diagonal-straddling tiles
            rows = lax.broadcasted_iota(jnp.int32, (gq, tk), 0)
            cols = lax.broadcasted_iota(jnp.int32, (gq, tk), 1)
            q_pos = qi * tq + lax.rem(rows, tq)  # row r -> query position qi*tq + r % tq
            k_pos = ki * tk + cols
            s = jnp.where(k_pos <= q_pos, s, jnp.float32(-1e30))

        m_prev = m_ref[...]                                       # (gq, 1)
        m_new = jnp.maximum(m_prev, jnp.max(s, axis=-1, keepdims=True))
        alpha = jnp.exp(m_prev - m_new)
        p = jnp.exp(s - m_new)                                    # (gq, tk) f32
        l_ref[...] = alpha * l_ref[...] + jnp.sum(p, axis=-1, keepdims=True)
        acc_ref[...] = alpha * acc_ref[...] + lax.dot_general(
            p.astype(v.dtype), v, (((1,), (0,)), ((), ())),
            preferred_element_type=jnp.float32,
        )                                                         # (gq, hd) f32
        m_ref[...] = m_new

    if is_causal:
        q_first = qi * tq
        q_last = q_first + (tq - 1)
        k_first = ki * tk
        k_last = k_first + (tk - 1)
        visible = k_first <= q_last        # tile not fully above the diagonal
        straddles = k_last > q_first       # some (q, k) pairs in the tile are masked
        pl.when(jnp.logical_and(visible, straddles))(lambda: _tile_update(True))
        pl.when(jnp.logical_and(visible, jnp.logical_not(straddles)))(
            lambda: _tile_update(False))
    else:
        _tile_update(False)

    @pl.when(ki == pl.num_programs(3) - 1)
    def _finalize():
        # Exact divide (once per q tile) — avoids approx-reciprocal error.
        out = acc_ref[...] / l_ref[...]
        o_ref[0] = out.reshape(group, tq, hd).astype(o_ref.dtype)


def pallas_gqa_attention(q, k, v, *, is_causal: bool) -> jax.Array:
    """q: (B, Hq, L, hd), k/v: (B, Hkv, L, hd) -> (B, Hq, L, hd)."""
    B, Hq, L, hd = q.shape
    _, Hkv, _, _ = k.shape
    assert Hq % Hkv == 0
    group = Hq // Hkv
    scale = 1.0 / float(hd) ** 0.5

    # Bigger q tiles cut K/V HBM re-reads (L/tq re-reads per batch*kv-head).
    tq = _pick_tile(L, (512, 256, 128))
    tk = _pick_tile(L, (256, 128))
    # TODO(synk): pad L / masked-tail path for L not a multiple of 128 at scale
    #             (the full-extent fallback is only meant for tiny demo shapes).

    n_q_tiles = L // tq
    n_kv_tiles = L // tk

    kernel = functools.partial(
        _flash_attn_kernel, scale=scale, is_causal=is_causal,
        group=group, tq=tq, tk=tk, hd=hd,
    )

    # Under causal, clamp the kv block index so fully-masked tiles map to the
    # same block as the last needed one -> Pallas elides the DMA entirely.
    if is_causal:
        def kv_map(b, h, qi, ki):
            last_needed = (qi * tq + (tq - 1)) // tk
            return (b, h, jnp.minimum(ki, last_needed), 0)
    else:
        def kv_map(b, h, qi, ki):
            return (b, h, ki, 0)

    flops = 4 * B * Hq * L * L * hd
    transc = B * Hq * L * L
    kv_bytes = (k.size + v.size) * k.dtype.itemsize * n_q_tiles
    if is_causal:
        flops //= 2
        transc //= 2
        kv_bytes //= 2
    cost = pl.CostEstimate(
        flops=flops,
        transcendentals=transc,
        bytes_accessed=2 * q.size * q.dtype.itemsize + kv_bytes,
    )

    return pl.pallas_call(
        kernel,
        out_shape=jax.ShapeDtypeStruct((B, Hq, L, hd), q.dtype),
        grid_spec=pltpu.PrefetchScalarGridSpec(
            num_scalar_prefetch=0,
            grid=(B, Hkv, n_q_tiles, n_kv_tiles),
            in_specs=[
                # All `group` q heads of kv-head h in one block; resident across ki.
                pl.BlockSpec((1, group, tq, hd),
                             lambda b, h, qi, ki: (b, h, qi, 0)),
                # K/V: one tile per grid step, DMA elided on causally-skipped steps.
                pl.BlockSpec((1, 1, tk, hd), kv_map),
                pl.BlockSpec((1, 1, tk, hd), kv_map),
            ],
            out_specs=pl.BlockSpec(
                (1, group, tq, hd), lambda b, h, qi, ki: (b, h, qi, 0)
            ),
            scratch_shapes=[
                pltpu.VMEM((group * tq, hd), q.dtype),       # pre-scaled q
                pltpu.VMEM((group * tq, 1), jnp.float32),    # running max m
                pltpu.VMEM((group * tq, 1), jnp.float32),    # running sum l
                pltpu.VMEM((group * tq, hd), jnp.float32),   # running acc
            ],
        ),
        compiler_params=pltpu.CompilerParams(
            dimension_semantics=("parallel", "parallel", "parallel", "arbitrary"),
            vmem_limit_bytes=_vmem_limit_bytes(),
        ),
        cost_estimate=cost,
    )(q, k, v)


# ---------------------------------------------------------------------------
# RoPE (torchtune RotaryPositionalEmbeddings convention: interleaved pairs)
# Plain-JAX glue — small elementwise rotation.
# ---------------------------------------------------------------------------
def apply_rope(x: jax.Array, base: float = 10000.0) -> jax.Array:
    """x: (B, L, H, hd) -> same shape with rotary embedding applied."""
    B, L, H, hd = x.shape
    half = hd // 2
    inv_freq = 1.0 / (base ** (jnp.arange(0, hd, 2, dtype=jnp.float32) / hd))
    pos = jnp.arange(L, dtype=jnp.float32)
    freqs = pos[:, None] * inv_freq[None, :]            # (L, half)
    cos = jnp.cos(freqs)[None, :, None, :]              # (1, L, 1, half)
    sin = jnp.sin(freqs)[None, :, None, :]

    xr = x.astype(jnp.float32).reshape(B, L, H, half, 2)
    x0, x1 = xr[..., 0], xr[..., 1]
    o0 = x0 * cos - x1 * sin
    o1 = x1 * cos + x0 * sin
    out = jnp.stack([o0, o1], axis=-1).reshape(B, L, H, hd)
    return out.astype(x.dtype)


# ---------------------------------------------------------------------------
# GQA forward (matches the PyTorch module semantics; dropout=0 / eval mode)
# ---------------------------------------------------------------------------
def gqa_forward(
    x: jax.Array,
    w_qkv: jax.Array,          # (D, (Hq + 2*Hkv) * hd), stored (in, out)
    w_o: jax.Array,            # (D, D), stored (in, out)
    *,
    q_heads_num: int,
    kv_heads_num: int,
    use_rope: bool = True,
    is_causal: bool = True,
) -> jax.Array:
    assert x.ndim == 3
    B, L, D = x.shape
    Hq, Hkv = q_heads_num, kv_heads_num
    hd = D // Hq

    # qkv projection (tiled Pallas matmul)
    qkv = pallas_linear(x.reshape(B * L, D), w_qkv).reshape(B, L, -1)

    q = qkv[:, :, : Hq * hd].reshape(B, L, Hq, hd)
    kv = qkv[:, :, Hq * hd:]
    k = kv[:, :, : Hkv * hd].reshape(B, L, Hkv, hd)
    v = kv[:, :, Hkv * hd:].reshape(B, L, Hkv, hd)

    if use_rope:
        q = apply_rope(q)
        k = apply_rope(k)

    # (B, L, H, hd) -> (B, H, L, hd)  — layout plumbing kept in XLA for now.
    q = jnp.transpose(q, (0, 2, 1, 3))
    k = jnp.transpose(k, (0, 2, 1, 3))
    v = jnp.transpose(v, (0, 2, 1, 3))

    y = pallas_gqa_attention(q, k, v, is_causal=is_causal)   # (B, Hq, L, hd)

    y = jnp.transpose(y, (0, 2, 1, 3)).reshape(B, L, D)

    # output projection (tiled Pallas matmul)
    return pallas_linear(y.reshape(B * L, D), w_o).reshape(B, L, D)


if __name__ == "__main__":
    # Small shapes consistent with the module's forward:
    B, L, D = 2, 8, 32
    Hq, Hkv = 4, 2                       # head_dim = 8, group = 2
    hd = D // Hq

    key = jax.random.PRNGKey(0)
    kx, kqkv, ko = jax.random.split(key, 3)

    x = jax.random.normal(kx, (B, L, D), dtype=jnp.float32)
    # Deterministic synthetic weights, stored (in, out); equivalent to x @ W.T
    # of a torch nn.Linear with weight W of shape (out, in).
    w_qkv = jax.random.normal(kqkv, (D, (Hq + 2 * Hkv) * hd), dtype=jnp.float32) * 0.05
    w_o = jax.random.normal(ko, (D, D), dtype=jnp.float32) * 0.05

    out = gqa_forward(
        x, w_qkv, w_o,
        q_heads_num=Hq, kv_heads_num=Hkv,
        use_rope=True, is_causal=True,
    )
    jax.block_until_ready(out)
    assert out.shape == (B, L, D)
    print("KERNEL_OK")
</pallas_src>

<mosaic_0001>
module attributes {stable_mosaic.version = 11 : i64} {
  func.func @_matmul_kernel(%arg0: i32, %arg1: i32, %arg2: i32, %arg3: memref<16x32xf32, #tpu.memory_space<vmem>>, %arg4: memref<32x64xf32, #tpu.memory_space<vmem>>, %arg5: memref<16x64xf32, #tpu.memory_space<vmem>>, %arg6: memref<16x64xf32, #tpu.memory_space<vmem>>) attributes {dimension_semantics = [#tpu.dimension_semantics<parallel>, #tpu.dimension_semantics<parallel>, #tpu.dimension_semantics<arbitrary>], iteration_bounds = array<i64: 1, 1, 1>, scalar_prefetch = 0 : i64, scratch_operands = 1 : i64, tpu.core_type = #tpu.core_type<tc>, window_params = [{transform_indices = @transform_0, window_bounds = array<i64: 16, 32>}, {transform_indices = @transform_1, window_bounds = array<i64: 32, 64>}, {transform_indices = @transform_2, window_bounds = array<i64: 16, 64>}]} {
    %c0_i32 = arith.constant 0 : i32
    %0 = arith.cmpi eq, %arg2, %c0_i32 : i32
    %1 = arith.extui %0 : i1 to i32
    %c0_i32_0 = arith.constant 0 : i32
    %2 = arith.cmpi ne, %1, %c0_i32_0 : i32
    scf.if %2 {
      %cst_10 = arith.constant 0.000000e+00 : f32
      %12 = vector.broadcast %cst_10 : f32 to vector<16x64xf32>
      %c0_11 = arith.constant 0 : index
      %c0_12 = arith.constant 0 : index
      %13 = vector.load %arg6[%c0_11, %c0_12] : memref<16x64xf32, #tpu.memory_space<vmem>>, vector<16x64xf32>
      tpu.vector_store %arg6[%c0_11, %c0_12], %12 {strides = array<i32>} : memref<16x64xf32, #tpu.memory_space<vmem>>, vector<16x64xf32>,
    } else {
    }
    %c0 = arith.constant 0 : index
    %c0_1 = arith.constant 0 : index
    %3 = vector.load %arg6[%c0, %c0_1] : memref<16x64xf32, #tpu.memory_space<vmem>>, vector<16x64xf32>
    %c0_2 = arith.constant 0 : index
    %c0_3 = arith.constant 0 : index
    %4 = vector.load %arg3[%c0_2, %c0_3] : memref<16x32xf32, #tpu.memory_space<vmem>>, vector<16x32xf32>
    %c0_4 = arith.constant 0 : index
    %c0_5 = arith.constant 0 : index
    %5 = vector.load %arg4[%c0_4, %c0_5] : memref<32x64xf32, #tpu.memory_space<vmem>>, vector<32x64xf32>
    %cst = arith.constant dense<0.000000e+00> : vector<16x64xf32>
    %6 = tpu.matmul %4, %5, %cst {dimension_numbers = #tpu.dot_dimension_numbers<[1], [0], [0], [1], [0, 0, 1, 1], [], []>} : vector<16x32xf32>, vector<32x64xf32>, vector<16x64xf32> -> vector<16x64xf32>
    %7 = arith.addf %3, %6 : vector<16x64xf32>
    %c0_6 = arith.constant 0 : index
    %c0_7 = arith.constant 0 : index
    %8 = vector.load %arg6[%c0_6, %c0_7] : memref<16x64xf32, #tpu.memory_space<vmem>>, vector<16x64xf32>
    tpu.vector_store %arg6[%c0_6, %c0_7], %7 {strides = array<i32>} : memref<16x64xf32, #tpu.memory_space<vmem>>, vector<16x64xf32>,
    %c0_i32_8 = arith.constant 0 : i32
    %9 = arith.cmpi eq, %arg2, %c0_i32_8 : i32
    %10 = arith.extui %9 : i1 to i32
    %c0_i32_9 = arith.constant 0 : i32
    %11 = arith.cmpi ne, %10, %c0_i32_9 : i32
    scf.if %11 {
      %c0_10 = arith.constant 0 : index
      %c0_11 = arith.constant 0 : index
      %12 = vector.load %arg6[%c0_10, %c0_11] : memref<16x64xf32, #tpu.memory_space<vmem>>, vector<16x64xf32>
      %c0_12 = arith.constant 0 : index
      %c0_13 = arith.constant 0 : index
      %13 = vector.load %arg5[%c0_12, %c0_13] : memref<16x64xf32, #tpu.memory_space<vmem>>, vector<16x64xf32>
      tpu.vector_store %arg5[%c0_12, %c0_13], %12 {strides = array<i32>} : memref<16x64xf32, #tpu.memory_space<vmem>>, vector<16x64xf32>,
    } else {
    }
    return
  }
  func.func @transform_0(%arg0: i32, %arg1: i32, %arg2: i32) -> (i32, i32) {
    %c0_i32 = arith.constant 0 : i32
    return %arg0, %arg2 : i32, i32
  }
  func.func @transform_1(%arg0: i32, %arg1: i32, %arg2: i32) -> (i32, i32) {
    %c0_i32 = arith.constant 0 : i32
    return %arg2, %arg1 : i32, i32
  }
  func.func @transform_2(%arg0: i32, %arg1: i32, %arg2: i32) -> (i32, i32) {
    %c0_i32 = arith.constant 0 : i32
    return %arg0, %arg1 : i32, i32
  }
}

</mosaic_0001>

<llo_original>
// kernel: tpu_custom_call.1
$region0: #{tpu_custom_call.1}
  #allocation0 [shape = 'u32[]', space=smem, size = 0x4, offset = 0x4, fixed_abs, tag = 'smem constant byte address 0x4 - core index']
  #allocation1 [shape = 'u32[144,128]{1,0:T(1,128)}', space=vmem, size = 0x12000, scoped, tag = 'internal scratch']
  #allocation2 [shape = 'f32[16,64]{1,0:T(8,128)}', space=vmem, size = 0x2000, scoped, tag = 'scratch operand']
  %s0 = inlined_call_operand.hbm [shape: f32[16,32], index: 0, kind: input, shape index: {}]
  %s1 = inlined_call_operand.hbm [shape: f32[32,64], index: 1, kind: input, shape index: {}]
  %s2 = inlined_call_operand.hbm [shape: f32[16,64], index: 2, kind: output, shape index: {}]
  %s3 = sld [smem:[#allocation0]]
  $region34: #{tpu_custom_call.1} parent=0
    _
  %s5 = ssub.s32 1, %s3
  %s6 = scalar_select 0, %s5, %s3
  $region1: #{tpu_custom_call.1} parent=0
    #allocation3 [shape = 'u8[8192]{0}', space=vmem, size = 0x2000, scoped, tag = 'input window, operand 0, single buffered']
    #allocation4 [shape = 's32[1]{0}', space=sflag, size = 0x4, scoped, tag = 'scoped memory for tpu_custom_call.1']
    #allocation5 [shape = 's32[1]{0}', space=sflag, size = 0x4, scoped, tag = 'scoped memory for tpu_custom_call.1']
    #allocation6 [shape = 'u8[16384]{0}', space=vmem, size = 0x4000, scoped, tag = 'input window, operand 1, single buffered']
    #allocation7 [shape = 's32[1]{0}', space=sflag, size = 0x4, scoped, tag = 'scoped memory for tpu_custom_call.1']
    #allocation8 [shape = 'u8[8192]{0}', space=vmem, size = 0x2000, scoped, tag = 'output window, operand 0, single buffered']
    %7 = vsyncpa [#allocation4], 0
    %8 = vsyncpa [#allocation7], 0
    %9 = vsyncpa [#allocation5], 0
    // Predicated region
    $region2: #{tpu_custom_call.1} parent=1 // pred_check
      _
    $region3: #{tpu_custom_call.1} parent=1 // pred_check_branch
      %11 = sbr.rel (0) target = $region5
    $region4: #{tpu_custom_call.1} parent=1 // pred_region
      %s13 = ssub.s32 256, 256
      %14 = vsyncadd [#allocation4], %s13
      %s15 = sshll.u32 [#allocation3], 4
      %s16 = int_to_ptr.vmem [resolvable:$true] %s15
      %21 = dma.hbm_to_vmem [thread:$0]  %s0, 256, %s16, [#allocation4], 128, 128, 8
    $region5: #{tpu_custom_call.1} parent=1 // pred_fallthru
      _
    // Predicated region
    $region6: #{tpu_custom_call.1} parent=1 // pred_check
      _
    $region7: #{tpu_custom_call.1} parent=1 // pred_check_branch
      %23 = sbr.rel (0) target = $region9
    $region8: #{tpu_custom_call.1} parent=1 // pred_region
      %s25 = ssub.s32 512, 512
      %26 = vsyncadd [#allocation7], %s25
      %s27 = sshll.u32 [#allocation6], 4
      %s28 = int_to_ptr.vmem [resolvable:$true] %s27
      %33 = dma.hbm_to_vmem [thread:$0]  %s1, 512, %s28, [#allocation7], 128, 128, 8
    $region9: #{tpu_custom_call.1} parent=1 // pred_fallthru
      _
    // Predicated region
    $region10: #{tpu_custom_call.1} parent=1 // pred_check
      _
    $region11: #{tpu_custom_call.1} parent=1 // pred_check_branch
      %35 = sbr.rel (0) target = $region13
    $region12: #{tpu_custom_call.1} parent=1 // pred_region
      %36 = dma.done [#allocation4], 256
    $region13: #{tpu_custom_call.1} parent=1 // pred_fallthru
      _
    // Predicated region
    $region14: #{tpu_custom_call.1} parent=1 // pred_check
      _
    $region15: #{tpu_custom_call.1} parent=1 // pred_check_branch
      %38 = sbr.rel (0) target = $region17
    $region16: #{tpu_custom_call.1} parent=1 // pred_region
      %39 = dma.done [#allocation7], 512
    $region17: #{tpu_custom_call.1} parent=1 // pred_fallthru
      _
    %p40 = scmp.eq.s32.totalorder 0, 0
    // Predicated region
    $region18: #{tpu_custom_call.1} parent=1 // pred_check
      %p41 = pneg %p40
    $region19: #{tpu_custom_call.1} parent=1 // pred_check_branch
      %43 = sbr.rel (%p41) target = $region21
    $region20: #{tpu_custom_call.1} parent=1 // pred_region
      %vm44 = vcmask 523264
      %45 = vst.msk [vmem:[#allocation2] sm:$0xff] %vm44, 0.0
      %46 = vst.msk [vmem:[#allocation2 + $0x8] sm:$0xff] %vm44, 0.0
    $region21: #{tpu_custom_call.1} parent=1 // pred_fallthru
      _
    %v47 = vld [vmem:[#allocation2] sm:$0xff]
    %v48 = vld [vmem:[#allocation2 + $0x8] sm:$0xff]
    %v49 = vld [vmem:[#allocation3] sm:$0xff]
    %v50 = vld [vmem:[#allocation3 + $0x8] sm:$0xff]
    %v51 = vld [vmem:[#allocation6] sm:$0xff]
    %v52 = vld [vmem:[#allocation6 + $0x8] sm:$0xff]
    %v53 = vld [vmem:[#allocation6 + $0x10] sm:$0xff]
    %v54 = vld [vmem:[#allocation6 + $0x18] sm:$0xff]
    %vm55 = vcmask 261120
    %v57 = vsel %vm55, %v49, 0
    %v60 = vsel %vm55, %v50, 0
    %62 = vmatprep.subr.mxu0 0.0
    %63 = vmatpush1.msra.mxu0 %v51
    %64 = vmatprep.subr.mxu0 0.0
    %65 = vmatpush1.msra.mxu0 %v52
    %66 = vmatprep.subr.mxu0 0.0
    %67 = vmatpush1.msra.mxu0 %v53
    %68 = vmatprep.subr.mxu0 0.0
    %69 = vmatpush1.msra.mxu0 %v54
    %70 = vmatprep.subr.mxu0 0.0
    %71 = vmatpush1.msra.mxu0 0.0
    %72 = vmatprep.subr.mxu0 0.0
    %73 = vmatpush1.msra.mxu0 0.0
    %74 = vmatprep.subr.mxu0 0.0
    %75 = vmatpush1.msra.mxu0 0.0
    %76 = vmatprep.subr.mxu0 0.0
    %77 = vmatpush1.msra.mxu0 0.0
    %78 = vmatprep.subr.mxu0 0.0
    %79 = vmatpush1.msra.mxu0 0.0
    %80 = vmatprep.subr.mxu0 0.0
    %81 = vmatpush1.msra.mxu0 0.0
    %82 = vmatprep.subr.mxu0 0.0
    %83 = vmatpush1.msra.mxu0 0.0
    %84 = vmatprep.subr.mxu0 0.0
    %85 = vmatpush1.msra.mxu0 0.0
    %86 = vmatprep.subr.mxu0 0.0
    %87 = vmatpush1.msra.mxu0 0.0
    %88 = vmatprep.subr.mxu0 0.0
    %89 = vmatpush1.msra.mxu0 0.0
    %90 = vmatprep.subr.mxu0 0.0
    %91 = vmatpush1.msra.mxu0 0.0
    %92 = vmatprep.subr.mxu0 0.0
    %93 = vmatpush1.msra.mxu0 0.0
    %94 = vmatprep.subr.mxu0 0.0
    %95 = vmatpush1.msra.mxu0 0.0
    %96 = vmatprep.subr.mxu0 0.0
    %97 = vmatpush1.msra.mxu0 0.0
    %98 = vmatprep.subr.mxu0 0.0
    %99 = vmatpush1.msra.mxu0 0.0
    %100 = vmatprep.subr.mxu0 0.0
    %101 = vmatpush1.msra.mxu0 0.0
    %102 = vmatprep.subr.mxu0 0.0
    %103 = vmatpush1.msra.mxu0 0.0
    %104 = vmatprep.subr.mxu0 0.0
    %105 = vmatpush1.msra.mxu0 0.0
    %106 = vmatprep.subr.mxu0 0.0
    %107 = vmatpush1.msra.mxu0 0.0
    %108 = vmatprep.subr.mxu0 0.0
    %109 = vmatpush1.msra.mxu0 0.0
    %110 = vmatprep.subr.mxu0 0.0
    %111 = vmatpush1.msra.mxu0 0.0
    %112 = vmatprep.subr.mxu0 0.0
    %113 = vmatpush1.msra.mxu0 0.0
    %114 = vmatprep.subr.mxu0 0.0
    %115 = vmatpush1.msra.mxu0 0.0
    %116 = vmatprep.subr.mxu0 0.0
    %117 = vmatpush1.msra.mxu0 0.0
    %118 = vmatprep.subr.mxu0 0.0
    %119 = vmatpush1.msra.mxu0 0.0
    %120 = vmatprep.subr.mxu0 0.0
    %121 = vmatpush1.msra.mxu0 0.0
    %122 = vmatprep.subr.mxu0 0.0
    %123 = vmatpush1.msra.mxu0 0.0
    %124 = vmatprep.subr.mxu0 0.0
    %125 = vmatpush1.msra.mxu0 0.0
    %126 = vmatprep.mubr.f32.mxu0 0.0
    %127 = vmatmul.mubr.f32.gmra.mrb[0].mxu0 %v57
    %v128 = vpop.f32.mrb[0].mxu0
    %v129 = vadd.f32 0.0, %v128
    %v130 = vpop.f32.mrb[0].mxu0
    %131 = vmatprep.mubr.f32.mxu0 0.0
    %132 = vmatmul.mubr.f32.gmra.mrb[0].mxu0 %v60
    %v133 = vpop.f32.mrb[0].mxu0
    %v134 = vadd.f32 0.0, %v133
    %v135 = vpop.f32.mrb[0].mxu0
    %136 = vdwg.mxu0
    %v137 = vadd.f32 %v47, %v129
    %v138 = vadd.f32 %v48, %v134
    %vm139 = vcmask 523264
    %140 = vst.msk [vmem:[#allocation2] sm:$0xff] %vm139, %v137
    %141 = vst.msk [vmem:[#allocation2 + $0x8] sm:$0xff] %vm139, %v138
    // Predicated region
    $region22: #{tpu_custom_call.1} parent=1 // pred_check
      %p142 = pneg %p40
    $region23: #{tpu_custom_call.1} parent=1 // pred_check_branch
      %144 = sbr.rel (%p142) target = $region25
    $region24: #{tpu_custom_call.1} parent=1 // pred_region
      %v145 = vld [vmem:[#allocation2] sm:$0xff]
      %v146 = vld [vmem:[#allocation2 + $0x8] sm:$0xff]
      %147 = vst.msk [vmem:[#allocation8] sm:$0xff] %vm139, %v145
      %148 = vst.msk [vmem:[#allocation8 + $0x8] sm:$0xff] %vm139, %v146
    $region25: #{tpu_custom_call.1} parent=1 // pred_fallthru
      _
    // Predicated region
    $region26: #{tpu_custom_call.1} parent=1 // pred_check
      _
    $region27: #{tpu_custom_call.1} parent=1 // pred_check_branch
      %150 = sbr.rel (0) target = $region29
    $region28: #{tpu_custom_call.1} parent=1 // pred_region
      %s152 = ssub.s32 256, 256
      %153 = vsyncadd [#allocation5], %s152
      %s154 = sshll.u32 [#allocation8], 4
      %s155 = int_to_ptr.vmem [resolvable:$true] %s154
      %160 = dma.vmem_to_hbm [thread:$0]  %s155, 256, %s2, [#allocation5], 128, 128, 8
    $region29: #{tpu_custom_call.1} parent=1 // pred_fallthru
      _
    // Predicated region
    $region30: #{tpu_custom_call.1} parent=1 // pred_check
      _
    $region31: #{tpu_custom_call.1} parent=1 // pred_check_branch
      %162 = sbr.rel (0) target = $region33
    $region32: #{tpu_custom_call.1} parent=1 // pred_region
      %163 = dma.done [#allocation5], 256
    $region33: #{tpu_custom_call.1} parent=1 // pred_fallthru
      _
    %164 = vsyncpa [#allocation4], 1
    %165 = vsyncpa [#allocation7], 1
    %166 = vsyncpa [#allocation5], 1

</llo_original>
